<compile_context>
chip_gen: v7x
topology: tpu7x:2x2x1
jax: 0.10.0
libtpu: 0.0.40
codegen_flags: <defaults>
</compile_context>

<pallas_src>
import math

import jax
import jax.numpy as jnp
from jax import lax
from jax.experimental import pallas as pl
from jax.experimental.pallas import tpu as pltpu


def _round_up(n, m):
    return pl.cdiv(n, m) * m


# ----------------------------------------------------------------------------
# Fused linear projection: out = x @ W + b   (row- and column-tiled)
# ----------------------------------------------------------------------------
def linear_kernel(x_ref, w_ref, b_ref, o_ref):
    acc = jnp.dot(x_ref[...], w_ref[...], preferred_element_type=jnp.float32)
    o_ref[...] = (acc + b_ref[...].astype(jnp.float32)).astype(o_ref.dtype)


def linear_forward(x2d, w, b, *, max_row_tile=256, max_col_tile=512):
    """x2d: (N, D_in); w: (D_in, D_out); b: (D_out,) -> (N, D_out)."""
    n, d_in = x2d.shape
    d_out = w.shape[1]

    row_tile = min(max_row_tile, _round_up(n, 8))
    n_pad = _round_up(n, row_tile)
    col_tile = min(max_col_tile, d_out)
    d_out_pad = _round_up(d_out, col_tile)

    if n_pad != n:
        x2d = jnp.pad(x2d, ((0, n_pad - n), (0, 0)))
    if d_out_pad != d_out:
        w = jnp.pad(w, ((0, 0), (0, d_out_pad - d_out)))
        b = jnp.pad(b, ((0, d_out_pad - d_out),))
    b2d = b.reshape(1, d_out_pad)

    itemsize = x2d.dtype.itemsize
    cost = pl.CostEstimate(
        flops=2 * n_pad * d_in * d_out_pad,
        transcendentals=0,
        bytes_accessed=(x2d.size * itemsize
                        + w.size * w.dtype.itemsize
                        + b2d.size * b2d.dtype.itemsize
                        + n_pad * d_out_pad * itemsize),
    )

    out = pl.pallas_call(
        linear_kernel,
        out_shape=jax.ShapeDtypeStruct((n_pad, d_out_pad), x2d.dtype),
        grid_spec=pltpu.PrefetchScalarGridSpec(
            num_scalar_prefetch=0,
            grid=(n_pad // row_tile, d_out_pad // col_tile),
            in_specs=[
                pl.BlockSpec((row_tile, d_in), lambda i, j: (i, 0)),
                pl.BlockSpec((d_in, col_tile), lambda i, j: (0, j)),
                pl.BlockSpec((1, col_tile), lambda i, j: (0, j)),
            ],
            out_specs=pl.BlockSpec((row_tile, col_tile), lambda i, j: (i, j)),
        ),
        compiler_params=pltpu.CompilerParams(
            dimension_semantics=("parallel", "parallel")),
        cost_estimate=cost,
    )(x2d, w, b2d)
    return out[:n, :d_out]


# ----------------------------------------------------------------------------
# Flash-style scaled-dot-product attention (scale pre-folded into Wq)
# ----------------------------------------------------------------------------
def _attn_body(q_ref, k_ref, v_ref, mask_ref, kv_len, o_ref, m_sc, l_sc, acc_sc):
    ki = pl.program_id(2)

    @pl.when(ki == 0)
    def _():
        m_sc[...] = jnp.full_like(m_sc, -jnp.inf)
        l_sc[...] = jnp.zeros_like(l_sc)
        acc_sc[...] = jnp.zeros_like(acc_sc)

    # scores = q @ k^T in the input dtype (full-rate MXU), f32 accumulation.
    # 1/sqrt(d_k) was folded into the Q projection weights.
    s = jnp.einsum('bqd,bkd->bqk', q_ref[...], k_ref[...],
                   preferred_element_type=jnp.float32)

    if mask_ref is not None:
        # Shared (1, tq, tk) int8 mask block, broadcast over the bh block dim.
        s = jnp.where(mask_ref[...] == 0, -1e9, s)
    elif kv_len is not None:
        # Mask-free variant but kv was padded: mask padded columns in-kernel.
        tk = s.shape[-1]
        col = ki * tk + lax.broadcasted_iota(jnp.int32, s.shape, 2)
        s = jnp.where(col < kv_len, s, -1e9)

    # Online softmax accumulation across kv tiles (numerically stable, f32).
    m_new = jnp.maximum(m_sc[...], jnp.max(s, axis=-1, keepdims=True))
    alpha = jnp.exp(m_sc[...] - m_new)
    p = jnp.exp(s - m_new)
    l_sc[...] = alpha * l_sc[...] + jnp.sum(p, axis=-1, keepdims=True)
    acc_sc[...] = alpha * acc_sc[...] + jnp.einsum(
        'bqk,bkd->bqd', p.astype(v_ref.dtype), v_ref[...],
        preferred_element_type=jnp.float32)
    m_sc[...] = m_new

    @pl.when(ki == pl.num_programs(2) - 1)
    def _():
        inv_l = pl.reciprocal(l_sc[...], approx=True)
        o_ref[...] = (acc_sc[...] * inv_l).astype(o_ref.dtype)


def _make_attn_kernel(has_mask, kv_len):
    if has_mask:
        def kernel(q_ref, k_ref, v_ref, mask_ref, o_ref, m_sc, l_sc, acc_sc):
            _attn_body(q_ref, k_ref, v_ref, mask_ref, None,
                       o_ref, m_sc, l_sc, acc_sc)
    else:
        def kernel(q_ref, k_ref, v_ref, o_ref, m_sc, l_sc, acc_sc):
            _attn_body(q_ref, k_ref, v_ref, None, kv_len,
                       o_ref, m_sc, l_sc, acc_sc)
    return kernel


def attention_forward(q, k, v, mask=None, *, q_tile=256, kv_tile=256, bh_block=8):
    """q: (BH, Sq, d_k); k, v: (BH, Sk, d_k); mask: None or (Sq, Sk) shared
    across batch and heads.  Scores assumed pre-scaled (scale folded into Wq)."""
    bh, sq, d_k = q.shape
    sk = k.shape[1]

    b_blk = min(bh_block, bh)
    tq = min(q_tile, _round_up(sq, 8))
    tk = min(kv_tile, _round_up(sk, 8))
    bh_pad = _round_up(bh, b_blk)
    sq_pad = _round_up(sq, tq)
    sk_pad = _round_up(sk, tk)

    if (bh_pad, sq_pad) != (bh, sq):
        q = jnp.pad(q, ((0, bh_pad - bh), (0, sq_pad - sq), (0, 0)))
    if (bh_pad, sk_pad) != (bh, sk):
        k = jnp.pad(k, ((0, bh_pad - bh), (0, sk_pad - sk), (0, 0)))
        v = jnp.pad(v, ((0, bh_pad - bh), (0, sk_pad - sk), (0, 0)))

    grid = (bh_pad // b_blk, sq_pad // tq, sk_pad // tk)
    itemsize = q.dtype.itemsize
    has_mask = mask is not None

    in_specs = [
        pl.BlockSpec((b_blk, tq, d_k), lambda g, qi, ki: (g, qi, 0)),
        pl.BlockSpec((b_blk, tk, d_k), lambda g, qi, ki: (g, ki, 0)),
        pl.BlockSpec((b_blk, tk, d_k), lambda g, qi, ki: (g, ki, 0)),
    ]
    operands = [q, k, v]
    mask_bytes = 0
    if has_mask:
        # Single shared int8 mask; never broadcast over batch*head.
        mask3 = mask.reshape(1, sq, sk).astype(jnp.int8)
        if (sq_pad, sk_pad) != (sq, sk):
            mask3 = jnp.pad(mask3, ((0, 0), (0, sq_pad - sq), (0, sk_pad - sk)))
        in_specs.append(pl.BlockSpec((1, tq, tk), lambda g, qi, ki: (0, qi, ki)))
        operands.append(mask3)
        mask_bytes = mask3.size  # int8: 1 byte/element
        kernel = _make_attn_kernel(True, None)
    else:
        kernel = _make_attn_kernel(False, sk if sk_pad != sk else None)

    cost = pl.CostEstimate(
        flops=4 * bh_pad * sq_pad * sk_pad * d_k,
        transcendentals=bh_pad * sq_pad * sk_pad,
        bytes_accessed=(2 * bh_pad * sq_pad * d_k * itemsize      # q + out
                        + 2 * bh_pad * sk_pad * d_k * itemsize    # k + v
                        + mask_bytes),
    )

    out = pl.pallas_call(
        kernel,
        out_shape=jax.ShapeDtypeStruct((bh_pad, sq_pad, d_k), q.dtype),
        grid_spec=pltpu.PrefetchScalarGridSpec(
            num_scalar_prefetch=0,
            grid=grid,
            in_specs=in_specs,
            out_specs=pl.BlockSpec((b_blk, tq, d_k), lambda g, qi, ki: (g, qi, 0)),
            scratch_shapes=[
                pltpu.VMEM((b_blk, tq, 1), jnp.float32),     # running max
                pltpu.VMEM((b_blk, tq, 1), jnp.float32),     # running sum
                pltpu.VMEM((b_blk, tq, d_k), jnp.float32),   # output accumulator
            ],
        ),
        compiler_params=pltpu.CompilerParams(
            dimension_semantics=("parallel", "parallel", "arbitrary")),
        cost_estimate=cost,
    )(*operands)

    return out[:bh, :sq, :]


# ----------------------------------------------------------------------------
# Full MultiHeadedAttention forward
# ----------------------------------------------------------------------------
def multi_headed_attention_forward(query, key, value, params, *, head, mask=None):
    """query/key/value: (B, S, E).  params: (wq,bq,wk,bk,wv,bv,wo,bo), weights
    stored (in, out).  mask: None or an array whose trailing two dims are
    (Sq, Sk), shared across batch and heads (torch's mask.unsqueeze(0) path)."""
    wq, bq, wk, bk, wv, bv, wo, bo = params
    batch, sq, embed = query.shape
    sk = key.shape[1]
    d_k = embed // head
    sm_scale = 1.0 / math.sqrt(d_k)

    # Fold 1/sqrt(d_k) into the Q projection (one-time weight transform).
    wq_s = (wq * sm_scale).astype(wq.dtype)
    bq_s = (bq * sm_scale).astype(bq.dtype)

    if (query is key) and (key is value):
        # Self-attention path: fused QKV projection (activations read once).
        w_qkv = jnp.concatenate([wq_s, wk, wv], axis=1)
        b_qkv = jnp.concatenate([bq_s, bk, bv], axis=0)
        qkv = linear_forward(query.reshape(-1, embed), w_qkv, b_qkv)
        q = qkv[:, :embed].reshape(batch, sq, embed)
        k = qkv[:, embed:2 * embed].reshape(batch, sk, embed)
        v = qkv[:, 2 * embed:].reshape(batch, sk, embed)
    else:
        q = linear_forward(query.reshape(-1, embed), wq_s, bq_s).reshape(batch, sq, embed)
        k = linear_forward(key.reshape(-1, embed), wk, bk).reshape(batch, sk, embed)
        v = linear_forward(value.reshape(-1, embed), wv, bv).reshape(batch, sk, embed)

    # TODO(synk): head split/merge still goes through XLA transposes; keeping
    # the (B*H, S, d_k) attention layout because per-head E-column blocks of
    # width d_k < 128 would violate the (8,128) BlockSpec lane constraint.
    def split_heads(x, s):
        return (x.reshape(batch, s, head, d_k)
                 .transpose(0, 2, 1, 3)
                 .reshape(batch * head, s, d_k))

    qh, kh, vh = split_heads(q, sq), split_heads(k, sk), split_heads(v, sk)

    if mask is not None:
        # torch: scores.masked_fill(mask.unsqueeze(0) == 0, -1e9) with a
        # (Sq, Sk) mask shared across batch and heads.
        mask_arr = jnp.asarray(mask)
        mask2 = jnp.broadcast_to(
            mask_arr.reshape((-1,) + mask_arr.shape[-2:])[0], (sq, sk))
        # TODO(synk): distinct per-batch (Sq, Sk) masks are not supported by
        # this shared-mask fast path.
    else:
        mask2 = None

    ctx = attention_forward(qh, kh, vh, mask2)            # (B*H, Sq, d_k)
    # TODO(synk): nn.Dropout(p=0.1) on attention probabilities is implemented
    # as the eval (identity) path; no in-kernel RNG dropout.

    x = (ctx.reshape(batch, head, sq, d_k)
            .transpose(0, 2, 1, 3)
            .reshape(batch * sq, embed))
    return linear_forward(x, wo, bo).reshape(batch, sq, embed)


# ----------------------------------------------------------------------------
# Pure-JAX reference (mirrors the PyTorch module), for correctness check.
# ----------------------------------------------------------------------------
def mha_reference(query, key, value, params, *, head, mask=None):
    wq, bq, wk, bk, wv, bv, wo, bo = params
    batch, sq, embed = query.shape
    sk = key.shape[1]
    d_k = embed // head
    hp = jax.lax.Precision.HIGHEST

    def lin(x, w, b):
        return jnp.matmul(x, w, precision=hp) + b

    q = lin(query, wq, bq).reshape(batch, sq, head, d_k).transpose(0, 2, 1, 3)
    k = lin(key, wk, bk).reshape(batch, sk, head, d_k).transpose(0, 2, 1, 3)
    v = lin(value, wv, bv).reshape(batch, sk, head, d_k).transpose(0, 2, 1, 3)

    scores = jnp.matmul(q, k.transpose(0, 1, 3, 2), precision=hp) / math.sqrt(d_k)
    if mask is not None:
        scores = jnp.where(jnp.broadcast_to(mask, scores.shape) == 0, -1e9, scores)
    p = jax.nn.softmax(scores, axis=-1)
    x = jnp.matmul(p, v, precision=hp)
    x = x.transpose(0, 2, 1, 3).reshape(batch, sq, embed)
    return lin(x, wo, bo)


if __name__ == "__main__":
    batch, seq, embed, head = 2, 8, 32, 4

    key0 = jax.random.PRNGKey(0)
    keys = jax.random.split(key0, 11)

    q_in = jax.random.normal(keys[0], (batch, seq, embed), jnp.float32)
    k_in = jax.random.normal(keys[1], (batch, seq, embed), jnp.float32)
    v_in = jax.random.normal(keys[2], (batch, seq, embed), jnp.float32)

    bound = 1.0 / math.sqrt(embed)

    def lin_params(kw, kb):
        w = jax.random.uniform(kw, (embed, embed), jnp.float32, -bound, bound)
        b = jax.random.uniform(kb, (embed,), jnp.float32, -bound, bound)
        return w, b

    wq, bq = lin_params(keys[3], keys[4])
    wk, bk = lin_params(keys[5], keys[6])
    wv, bv = lin_params(keys[7], keys[8])
    wo, bo = lin_params(keys[9], keys[10])
    params = (wq, bq, wk, bk, wv, bv, wo, bo)

    # Causal mask shared across batch and heads (like mask.unsqueeze(0)).
    causal = jnp.tril(jnp.ones((seq, seq), jnp.int32))

    out_nomask = multi_headed_attention_forward(
        q_in, k_in, v_in, params, head=head, mask=None)       # mask-free kernel
    out_masked = multi_headed_attention_forward(
        q_in, k_in, v_in, params, head=head, mask=causal)     # masked kernel
    out_self = multi_headed_attention_forward(
        q_in, q_in, q_in, params, head=head, mask=causal)     # fused-QKV path
    jax.block_until_ready((out_nomask, out_masked, out_self))

    ref_nomask = mha_reference(q_in, k_in, v_in, params, head=head, mask=None)
    ref_masked = mha_reference(q_in, k_in, v_in, params, head=head, mask=causal)
    ref_self = mha_reference(q_in, q_in, q_in, params, head=head, mask=causal)

    assert out_nomask.shape == (batch, seq, embed)
    assert out_masked.shape == (batch, seq, embed)
    assert out_self.shape == (batch, seq, embed)
    assert jnp.allclose(out_nomask, ref_nomask, atol=2e-3, rtol=2e-3)
    assert jnp.allclose(out_masked, ref_masked, atol=2e-3, rtol=2e-3)
    assert jnp.allclose(out_self, ref_self, atol=2e-3, rtol=2e-3)

    print("KERNEL_OK")
</pallas_src>

<mosaic_0001>
module attributes {stable_mosaic.version = 11 : i64} {
  func.func @linear_kernel(%arg0: i32, %arg1: i32, %arg2: memref<16x32xf32, #tpu.memory_space<vmem>>, %arg3: memref<32x32xf32, #tpu.memory_space<vmem>>, %arg4: memref<1x32xf32, #tpu.memory_space<vmem>>, %arg5: memref<16x32xf32, #tpu.memory_space<vmem>>) attributes {dimension_semantics = [#tpu.dimension_semantics<parallel>, #tpu.dimension_semantics<parallel>], iteration_bounds = array<i64: 1, 1>, scalar_prefetch = 0 : i64, scratch_operands = 0 : i64, tpu.core_type = #tpu.core_type<tc>, window_params = [{transform_indices = @transform_0, window_bounds = array<i64: 16, 32>}, {transform_indices = @transform_1, window_bounds = array<i64: 32, 32>}, {transform_indices = @transform_2, window_bounds = array<i64: 1, 32>}, {transform_indices = @transform_3, window_bounds = array<i64: 16, 32>}]} {
    %c0 = arith.constant 0 : index
    %c0_0 = arith.constant 0 : index
    %0 = vector.load %arg2[%c0, %c0_0] : memref<16x32xf32, #tpu.memory_space<vmem>>, vector<16x32xf32>
    %c0_1 = arith.constant 0 : index
    %c0_2 = arith.constant 0 : index
    %1 = vector.load %arg3[%c0_1, %c0_2] : memref<32x32xf32, #tpu.memory_space<vmem>>, vector<32x32xf32>
    %cst = arith.constant dense<0.000000e+00> : vector<16x32xf32>
    %2 = tpu.matmul %0, %1, %cst {dimension_numbers = #tpu.dot_dimension_numbers<[1], [0], [0], [1], [0, 0, 1, 1], [], []>} : vector<16x32xf32>, vector<32x32xf32>, vector<16x32xf32> -> vector<16x32xf32>
    %c0_3 = arith.constant 0 : index
    %c0_4 = arith.constant 0 : index
    %3 = vector.load %arg4[%c0_3, %c0_4] : memref<1x32xf32, #tpu.memory_space<vmem>>, vector<1x32xf32>
    %4 = vector.broadcast %3 : vector<1x32xf32> to vector<16x32xf32>
    %5 = arith.addf %2, %4 : vector<16x32xf32>
    %c0_5 = arith.constant 0 : index
    %c0_6 = arith.constant 0 : index
    %6 = vector.load %arg5[%c0_5, %c0_6] : memref<16x32xf32, #tpu.memory_space<vmem>>, vector<16x32xf32>
    tpu.vector_store %arg5[%c0_5, %c0_6], %5 {strides = array<i32>} : memref<16x32xf32, #tpu.memory_space<vmem>>, vector<16x32xf32>,
    return
  }
  func.func @transform_0(%arg0: i32, %arg1: i32) -> (i32, i32) {
    %c0_i32 = arith.constant 0 : i32
    %c0_i32_0 = arith.constant 0 : i32
    return %arg0, %c0_i32 : i32, i32
  }
  func.func @transform_1(%arg0: i32, %arg1: i32) -> (i32, i32) {
    %c0_i32 = arith.constant 0 : i32
    %c0_i32_0 = arith.constant 0 : i32
    return %c0_i32, %arg1 : i32, i32
  }
  func.func @transform_2(%arg0: i32, %arg1: i32) -> (i32, i32) {
    %c0_i32 = arith.constant 0 : i32
    %c0_i32_0 = arith.constant 0 : i32
    return %c0_i32, %arg1 : i32, i32
  }
  func.func @transform_3(%arg0: i32, %arg1: i32) -> (i32, i32) {
    %c0_i32 = arith.constant 0 : i32
    return %arg0, %arg1 : i32, i32
  }
}

</mosaic_0001>

<llo_original>
// kernel: tpu_custom_call.1
$region0: #{tpu_custom_call.1}
  #allocation0 [shape = 'u32[]', space=smem, size = 0x4, offset = 0x4, fixed_abs, tag = 'smem constant byte address 0x4 - core index']
  #allocation1 [shape = 'u32[144,128]{1,0:T(1,128)}', space=vmem, size = 0x12000, scoped, tag = 'internal scratch']
  %s0 = inlined_call_operand.hbm [shape: f32[16,32], index: 0, kind: input, shape index: {}]
  %s1 = inlined_call_operand.hbm [shape: f32[32,32], index: 1, kind: input, shape index: {}]
  %s2 = inlined_call_operand.vmem [shape: f32[1,32], index: 2, kind: input, shape index: {}]
  %s3 = inlined_call_operand.hbm [shape: f32[16,32], index: 3, kind: output, shape index: {}]
  %s4 = sld [smem:[#allocation0]]
  $region30: #{tpu_custom_call.1} parent=0
    _
  %s6 = ssub.s32 1, %s4
  %s7 = scalar_select 0, %s6, %s4
  $region1: #{tpu_custom_call.1} parent=0
    #allocation2 [shape = 'u8[8192]{0}', space=vmem, size = 0x2000, scoped, tag = 'input window, operand 0, single buffered']
    #allocation3 [shape = 's32[1]{0}', space=sflag, size = 0x4, scoped, tag = 'scoped memory for tpu_custom_call.1']
    #allocation4 [shape = 's32[1]{0}', space=sflag, size = 0x4, scoped, tag = 'scoped memory for tpu_custom_call.1']
    #allocation5 [shape = 'u8[16384]{0}', space=vmem, size = 0x4000, scoped, tag = 'input window, operand 1, single buffered']
    #allocation6 [shape = 's32[1]{0}', space=sflag, size = 0x4, scoped, tag = 'scoped memory for tpu_custom_call.1']
    #allocation7 [shape = 'u8[8192]{0}', space=vmem, size = 0x2000, scoped, tag = 'output window, operand 0, single buffered']
    %8 = vsyncpa [#allocation3], 0
    %9 = vsyncpa [#allocation6], 0
    %10 = vsyncpa [#allocation4], 0
    // Predicated region
    $region2: #{tpu_custom_call.1} parent=1 // pred_check
      _
    $region3: #{tpu_custom_call.1} parent=1 // pred_check_branch
      %12 = sbr.rel (0) target = $region5
    $region4: #{tpu_custom_call.1} parent=1 // pred_region
      %s14 = ssub.s32 256, 256
      %15 = vsyncadd [#allocation3], %s14
      %s16 = sshll.u32 [#allocation2], 4
      %s17 = int_to_ptr.vmem [resolvable:$true] %s16
      %22 = dma.hbm_to_vmem [thread:$0]  %s0, 256, %s17, [#allocation3], 128, 128, 8
    $region5: #{tpu_custom_call.1} parent=1 // pred_fallthru
      _
    // Predicated region
    $region6: #{tpu_custom_call.1} parent=1 // pred_check
      _
    $region7: #{tpu_custom_call.1} parent=1 // pred_check_branch
      %24 = sbr.rel (0) target = $region9
    $region8: #{tpu_custom_call.1} parent=1 // pred_region
      %s26 = ssub.s32 512, 512
      %27 = vsyncadd [#allocation6], %s26
      %s28 = sshll.u32 [#allocation5], 4
      %s29 = int_to_ptr.vmem [resolvable:$true] %s28
      %34 = dma.hbm_to_vmem [thread:$0]  %s1, 512, %s29, [#allocation6], 128, 128, 8
    $region9: #{tpu_custom_call.1} parent=1 // pred_fallthru
      _
    // Predicated region
    $region10: #{tpu_custom_call.1} parent=1 // pred_check
      _
    $region11: #{tpu_custom_call.1} parent=1 // pred_check_branch
      %36 = sbr.rel (0) target = $region13
    $region12: #{tpu_custom_call.1} parent=1 // pred_region
      _
    $region13: #{tpu_custom_call.1} parent=1 // pred_fallthru
      _
    // Predicated region
    $region14: #{tpu_custom_call.1} parent=1 // pred_check
      _
    $region15: #{tpu_custom_call.1} parent=1 // pred_check_branch
      %38 = sbr.rel (0) target = $region17
    $region16: #{tpu_custom_call.1} parent=1 // pred_region
      %39 = dma.done [#allocation3], 256
    $region17: #{tpu_custom_call.1} parent=1 // pred_fallthru
      _
    // Predicated region
    $region18: #{tpu_custom_call.1} parent=1 // pred_check
      _
    $region19: #{tpu_custom_call.1} parent=1 // pred_check_branch
      %41 = sbr.rel (0) target = $region21
    $region20: #{tpu_custom_call.1} parent=1 // pred_region
      %42 = dma.done [#allocation6], 512
    $region21: #{tpu_custom_call.1} parent=1 // pred_fallthru
      _
    %v43 = vld [vmem:[#allocation2] sm:$0xff]
    %v44 = vld [vmem:[#allocation2 + $0x8] sm:$0xff]
    %v45 = vld [vmem:[#allocation5] sm:$0xff]
    %v46 = vld [vmem:[#allocation5 + $0x8] sm:$0xff]
    %v47 = vld [vmem:[#allocation5 + $0x10] sm:$0xff]
    %v48 = vld [vmem:[#allocation5 + $0x18] sm:$0xff]
    %v49 = vld [vmem:[%s2] sm:$0x1]
    %v51 = vlaneseq
    %v52 = vshrl.u32 %v51, 7
    %v53 = vsub.s32 0, %v52
    %v54 = vrot.slane %v49, %v53
    %vm56 = vcmask 261120
    %v58 = vsel %vm56, %v43, 0
    %v61 = vsel %vm56, %v44, 0
    %63 = vmatprep.subr.mxu0 0.0
    %64 = vmatpush1.msra.mxu0 %v45
    %65 = vmatprep.subr.mxu0 0.0
    %66 = vmatpush1.msra.mxu0 %v46
    %67 = vmatprep.subr.mxu0 0.0
    %68 = vmatpush1.msra.mxu0 %v47
    %69 = vmatprep.subr.mxu0 0.0
    %70 = vmatpush1.msra.mxu0 %v48
    %71 = vmatprep.subr.mxu0 0.0
    %72 = vmatpush1.msra.mxu0 0.0
    %73 = vmatprep.subr.mxu0 0.0
    %74 = vmatpush1.msra.mxu0 0.0
    %75 = vmatprep.subr.mxu0 0.0
    %76 = vmatpush1.msra.mxu0 0.0
    %77 = vmatprep.subr.mxu0 0.0
    %78 = vmatpush1.msra.mxu0 0.0
    %79 = vmatprep.subr.mxu0 0.0
    %80 = vmatpush1.msra.mxu0 0.0
    %81 = vmatprep.subr.mxu0 0.0
    %82 = vmatpush1.msra.mxu0 0.0
    %83 = vmatprep.subr.mxu0 0.0
    %84 = vmatpush1.msra.mxu0 0.0
    %85 = vmatprep.subr.mxu0 0.0
    %86 = vmatpush1.msra.mxu0 0.0
    %87 = vmatprep.subr.mxu0 0.0
    %88 = vmatpush1.msra.mxu0 0.0
    %89 = vmatprep.subr.mxu0 0.0
    %90 = vmatpush1.msra.mxu0 0.0
    %91 = vmatprep.subr.mxu0 0.0
    %92 = vmatpush1.msra.mxu0 0.0
    %93 = vmatprep.subr.mxu0 0.0
    %94 = vmatpush1.msra.mxu0 0.0
    %95 = vmatprep.subr.mxu0 0.0
    %96 = vmatpush1.msra.mxu0 0.0
    %97 = vmatprep.subr.mxu0 0.0
    %98 = vmatpush1.msra.mxu0 0.0
    %99 = vmatprep.subr.mxu0 0.0
    %100 = vmatpush1.msra.mxu0 0.0
    %101 = vmatprep.subr.mxu0 0.0
    %102 = vmatpush1.msra.mxu0 0.0
    %103 = vmatprep.subr.mxu0 0.0
    %104 = vmatpush1.msra.mxu0 0.0
    %105 = vmatprep.subr.mxu0 0.0
    %106 = vmatpush1.msra.mxu0 0.0
    %107 = vmatprep.subr.mxu0 0.0
    %108 = vmatpush1.msra.mxu0 0.0
    %109 = vmatprep.subr.mxu0 0.0
    %110 = vmatpush1.msra.mxu0 0.0
    %111 = vmatprep.subr.mxu0 0.0
    %112 = vmatpush1.msra.mxu0 0.0
    %113 = vmatprep.subr.mxu0 0.0
    %114 = vmatpush1.msra.mxu0 0.0
    %115 = vmatprep.subr.mxu0 0.0
    %116 = vmatpush1.msra.mxu0 0.0
    %117 = vmatprep.subr.mxu0 0.0
    %118 = vmatpush1.msra.mxu0 0.0
    %119 = vmatprep.subr.mxu0 0.0
    %120 = vmatpush1.msra.mxu0 0.0
    %121 = vmatprep.subr.mxu0 0.0
    %122 = vmatpush1.msra.mxu0 0.0
    %123 = vmatprep.subr.mxu0 0.0
    %124 = vmatpush1.msra.mxu0 0.0
    %125 = vmatprep.subr.mxu0 0.0
    %126 = vmatpush1.msra.mxu0 0.0
    %127 = vmatprep.mubr.f32.mxu0 0.0
    %128 = vmatmul.mubr.f32.gmra.mrb[0].mxu0 %v58
    %v129 = vpop.f32.mrb[0].mxu0
    %v130 = vadd.f32 %v54, %v129
    %v131 = vpop.f32.mrb[0].mxu0
    %132 = vmatprep.mubr.f32.mxu0 0.0
    %133 = vmatmul.mubr.f32.gmra.mrb[0].mxu0 %v61
    %v134 = vpop.f32.mrb[0].mxu0
    %v135 = vadd.f32 %v54, %v134
    %v136 = vpop.f32.mrb[0].mxu0
    %137 = vdwg.mxu0
    %138 = vst.msk [vmem:[#allocation7] sm:$0xff] %vm56, %v130
    %139 = vst.msk [vmem:[#allocation7 + $0x8] sm:$0xff] %vm56, %v135
    // Predicated region
    $region22: #{tpu_custom_call.1} parent=1 // pred_check
      _
    $region23: #{tpu_custom_call.1} parent=1 // pred_check_branch
      %141 = sbr.rel (0) target = $region25
    $region24: #{tpu_custom_call.1} parent=1 // pred_region
      %s143 = ssub.s32 256, 256
      %144 = vsyncadd [#allocation4], %s143
      %s145 = sshll.u32 [#allocation7], 4
      %s146 = int_to_ptr.vmem [resolvable:$true] %s145
      %151 = dma.vmem_to_hbm [thread:$0]  %s146, 256, %s3, [#allocation4], 128, 128, 8
    $region25: #{tpu_custom_call.1} parent=1 // pred_fallthru
      _
    // Predicated region
    $region26: #{tpu_custom_call.1} parent=1 // pred_check
      _
    $region27: #{tpu_custom_call.1} parent=1 // pred_check_branch
      %153 = sbr.rel (0) target = $region29
    $region28: #{tpu_custom_call.1} parent=1 // pred_region
      %154 = dma.done [#allocation4], 256
    $region29: #{tpu_custom_call.1} parent=1 // pred_fallthru
      _
    %155 = vsyncpa [#allocation3], 1
    %156 = vsyncpa [#allocation6], 1
    %157 = vsyncpa [#allocation4], 1

</llo_original>
